<compile_context>
chip_gen: v5e
topology: v5e:2x2
jax: 0.10.0
libtpu: 0.0.40
codegen_flags: <defaults>
</compile_context>

<pallas_src>
import jax
import jax.numpy as jnp
from jax.experimental import pallas as pl
from jax.experimental.pallas import tpu as pltpu


def _round_up(x, m):
    return ((x + m - 1) // m) * m


def _pick_tile_b(B, tile_b):
    """Pick the batch tile: big enough to amortize per-step overhead, small
    enough to avoid large last-tile padding, and >=2 grid steps for large B
    (v7x has 2 TensorCores; a 1-step grid idles half the chip)."""
    B8 = _round_up(B, 8)
    tile_b = max(8, _round_up(tile_b, 8))
    if B8 <= tile_b:
        TB = B8
    else:
        # Sweep halvings of tile_b down to 128 (or tile_b itself if smaller)
        # and minimize padded waste; tie-break towards the larger tile.
        cands = []
        t = tile_b
        while True:
            cands.append(t)
            if t <= 128:
                break
            t //= 2
        TB = min(cands, key=lambda c: (_round_up(B, c) - B, -c))
    # v7x: ensure >= 2 grid steps when the batch is big enough to split.
    if B8 >= 256 and _round_up(B, TB) == TB:
        TB = _round_up(B8 // 2, 8)
    return TB


# ---------------------------------------------------------------------------
# Kernel: fcs1 -> relu -> (fc2 with fused state/action concat) -> relu -> fc3.
# Feature dims are lane-padded in build_kernel_params; padded entries are zero
# so the math is exact.
# ---------------------------------------------------------------------------
def critic_kernel(s_ref, a_ref, w1_ref, b1_ref, w2s_ref, w2a_ref, b2_ref,
                  w3_ref, b3_ref, out_ref):
    cdtype = w1_ref.dtype  # MXU compute dtype (bf16 by default)

    # Layer 1: xs = relu(state @ W1 + b1); MXU with f32 accumulation.
    xs = jnp.dot(s_ref[...].astype(cdtype), w1_ref[...],
                 preferred_element_type=jnp.float32) + b1_ref[...]
    xs = jnp.maximum(xs, 0.0)

    # Layer 2: x = relu(xs @ W2s + action @ W2a + b2).  The torch cat((xs, a))
    # is realized as two dots; the action dot has tiny K and is one MXU pass.
    x = jnp.dot(xs.astype(cdtype), w2s_ref[...],
                preferred_element_type=jnp.float32)
    x = x + jnp.dot(a_ref[...].astype(cdtype), w2a_ref[...],
                    preferred_element_type=jnp.float32)
    x = jnp.maximum(x + b2_ref[...], 0.0)

    # fc3 head (out_features == 1): keep it off the MXU.  VPU multiply against
    # the f32 weight row + XLU cross-lane reduction, all in f32.
    q = jnp.sum(x * w3_ref[...], axis=-1, keepdims=True) + b3_ref[...]
    out_ref[...] = q.astype(out_ref.dtype)


# ---------------------------------------------------------------------------
# Wrapper: batch tiling + VMEM-resident weights.
# ---------------------------------------------------------------------------
def critic_forward(state, action, kparams, *, tile_b=512,
                   vmem_limit_bytes=32 * 1024 * 1024):
    """state: (B, S), action: (B, A), kparams from build_kernel_params -> (B, 1)."""
    if state.ndim == 1:
        state = state[None, :]
    if action.ndim == 1:
        action = action[None, :]

    w1k, b1k, w2sk, w2ak, b2k, w3k, b3k = kparams
    B, S = state.shape
    A = action.shape[1]
    F1 = w1k.shape[1]
    F2 = w2sk.shape[1]

    TB = _pick_tile_b(B, tile_b)
    B_pad = _round_up(B, TB)
    if B_pad != B:
        state = jnp.pad(state, ((0, B_pad - B), (0, 0)))
        action = jnp.pad(action, ((0, B_pad - B), (0, 0)))

    grid = (B_pad // TB,)

    def const(arr):
        # Constant index map -> the block never changes, so the weight/bias
        # stays VMEM-resident while the activation DMAs pipeline against MXU
        # compute.  (bf16 params are <0.5 MiB total, so default buffering is
        # fine; no need for pl.Buffered(1) headroom at these sizes.)
        return pl.BlockSpec(arr.shape, lambda i: (0, 0))

    # Advisory cost hint: three matmuls + the VPU head, real bytes moved.
    flops = 2 * B_pad * (S * F1 + F1 * F2 + A * F2 + F2)
    operands = (state, action, w1k, b1k, w2sk, w2ak, b2k, w3k, b3k)
    bytes_accessed = sum(int(a.size) * a.dtype.itemsize for a in operands) \
        + B_pad * 1 * 4
    cost = pl.CostEstimate(flops=flops, transcendentals=0,
                           bytes_accessed=bytes_accessed)

    out = pl.pallas_call(
        critic_kernel,
        out_shape=jax.ShapeDtypeStruct((B_pad, 1), jnp.float32),
        grid=grid,
        in_specs=[
            pl.BlockSpec((TB, S), lambda i: (i, 0)),   # state: batch-tiled
            pl.BlockSpec((TB, A), lambda i: (i, 0)),   # action: batch-tiled
            const(w1k), const(b1k),                    # params: VMEM-resident
            const(w2sk), const(w2ak), const(b2k),
            const(w3k), const(b3k),
        ],
        out_specs=pl.BlockSpec((TB, 1), lambda i: (i, 0)),
        compiler_params=pltpu.CompilerParams(
            dimension_semantics=("parallel",),
            vmem_limit_bytes=vmem_limit_bytes,
        ),
        cost_estimate=cost,
    )(state, action, w1k, b1k, w2sk, w2ak, b2k, w3k, b3k)

    return out[:B]


# ---------------------------------------------------------------------------
# Parameter construction.
# ---------------------------------------------------------------------------
def init_critic_params(key, state_size, action_size,
                       fcs1_units=400, fc2_units=300):
    """Deterministic re-implementation of Critic.__init__ / reset_parameters.

    Weights are pre-transposed to (in, out); the fc2 weight is split into the
    slice multiplying xs and the slice multiplying the action (the column
    split of the torch cat).
    """
    ks = jax.random.split(key, 6)

    # hidden_init uses weight.size()[0] == out_features as "fan_in" (quirk of
    # the reference code) -> lim = 1/sqrt(out_features).
    lim1 = 1.0 / jnp.sqrt(jnp.float32(fcs1_units))
    lim2 = 1.0 / jnp.sqrt(jnp.float32(fc2_units))
    lim3 = 0.003

    w1t = jax.random.uniform(ks[0], (state_size, fcs1_units),
                             jnp.float32, -lim1, lim1)
    w2t = jax.random.uniform(ks[1], (fcs1_units + action_size, fc2_units),
                             jnp.float32, -lim2, lim2)
    w3t = jax.random.uniform(ks[2], (fc2_units, 1),
                             jnp.float32, -lim3, lim3)

    # Biases keep nn.Linear default init: U(-1/sqrt(in_features), +...).
    b1 = jax.random.uniform(ks[3], (1, fcs1_units), jnp.float32,
                            -1.0 / jnp.sqrt(jnp.float32(state_size)),
                            1.0 / jnp.sqrt(jnp.float32(state_size)))
    b2 = jax.random.uniform(ks[4], (1, fc2_units), jnp.float32,
                            -1.0 / jnp.sqrt(jnp.float32(fcs1_units + action_size)),
                            1.0 / jnp.sqrt(jnp.float32(fcs1_units + action_size)))
    b3 = jax.random.uniform(ks[5], (1, 1), jnp.float32,
                            -1.0 / jnp.sqrt(jnp.float32(fc2_units)),
                            1.0 / jnp.sqrt(jnp.float32(fc2_units)))

    w2s_t = w2t[:fcs1_units, :]     # multiplies xs
    w2a_t = w2t[fcs1_units:, :]     # multiplies action
    return (w1t, b1, w2s_t, w2a_t, b2, w3t, b3)


def build_kernel_params(params, state_size, action_size,
                        fcs1_units=400, fc2_units=300,
                        compute_dtype=jnp.bfloat16):
    """Pad the logical params into lane-aligned kernel params.

    * fcs1 columns padded 400 -> 512, fc2 columns 300 -> 384 (keep 384: padding
      to 512 would not reduce MXU N-passes on v6e/v7x and is exact on v5e).
    * All padded weight/bias entries are zero, so the math is exact.
    * Matmul weights are cast to compute_dtype (bf16 default = native MXU
      dtype); biases and the fc3 head stay f32 (head runs on the VPU/XLU).
    """
    w1t, b1, w2s_t, w2a_t, b2, w3t, b3 = params
    S, A = state_size, action_size
    F1 = _round_up(fcs1_units, 128)   # 400 -> 512
    F2 = _round_up(fc2_units, 128)    # 300 -> 384

    w1k = jnp.zeros((S, F1), jnp.float32).at[:, :fcs1_units].set(w1t)
    b1k = jnp.zeros((1, F1), jnp.float32).at[:, :fcs1_units].set(b1)

    w2sk = jnp.zeros((F1, F2), jnp.float32).at[:fcs1_units, :fc2_units].set(w2s_t)
    w2ak = jnp.zeros((A, F2), jnp.float32).at[:, :fc2_units].set(w2a_t)
    b2k = jnp.zeros((1, F2), jnp.float32).at[:, :fc2_units].set(b2)

    # fc3 head as an f32 row vector (VPU multiply + lane reduce in the kernel).
    w3k = jnp.zeros((1, F2), jnp.float32).at[:, :fc2_units].set(w3t[:, 0][None, :])
    b3k = b3.astype(jnp.float32)   # (1, 1)

    return (w1k.astype(compute_dtype), b1k,
            w2sk.astype(compute_dtype), w2ak.astype(compute_dtype), b2k,
            w3k, b3k)


def critic_reference(state, action, params):
    """Pure-JAX reference (mirrors the torch forward) for correctness checks."""
    w1t, b1, w2s_t, w2a_t, b2, w3t, b3 = params
    xs = jnp.maximum(state @ w1t + b1, 0.0)
    x = jnp.maximum(xs @ w2s_t + action @ w2a_t + b2, 0.0)
    return x @ w3t + b3


if __name__ == "__main__":
    B, STATE_SIZE, ACTION_SIZE = 2, 8, 2
    key = jax.random.PRNGKey(0)
    k_state, k_action, k_params = jax.random.split(key, 3)

    state = jax.random.normal(k_state, (B, STATE_SIZE), jnp.float32)
    action = jax.random.normal(k_action, (B, ACTION_SIZE), jnp.float32)
    params = init_critic_params(k_params, STATE_SIZE, ACTION_SIZE)
    q_ref = critic_reference(state, action, params)

    # --- f32 weights (exactness check of the kernel structure) ---
    kp_f32 = build_kernel_params(params, STATE_SIZE, ACTION_SIZE,
                                 compute_dtype=jnp.float32)
    q_f32 = jax.block_until_ready(critic_forward(state, action, kp_f32))
    assert q_f32.shape == (B, 1)
    assert jnp.allclose(q_f32, q_ref, atol=1e-4, rtol=1e-4)

    # --- default bf16 MXU path (f32 accumulation) ---
    kp_bf16 = build_kernel_params(params, STATE_SIZE, ACTION_SIZE)
    q_bf16 = jax.block_until_ready(critic_forward(state, action, kp_bf16))
    assert q_bf16.shape == (B, 1)
    assert jnp.allclose(q_bf16, q_ref, atol=5e-2, rtol=5e-2)

    # --- multi-tile grid with a padded last tile ---
    B2 = 50
    ks2, ka2 = jax.random.split(jax.random.PRNGKey(1))
    state2 = jax.random.normal(ks2, (B2, STATE_SIZE), jnp.float32)
    action2 = jax.random.normal(ka2, (B2, ACTION_SIZE), jnp.float32)
    q2 = jax.block_until_ready(
        critic_forward(state2, action2, kp_bf16, tile_b=16))
    q2_ref = critic_reference(state2, action2, params)
    assert q2.shape == (B2, 1)
    assert jnp.allclose(q2, q2_ref, atol=5e-2, rtol=5e-2)

    print("KERNEL_OK")
</pallas_src>

<mosaic_0001>
module attributes {stable_mosaic.version = 11 : i64} {
  func.func @critic_kernel(%arg0: i32, %arg1: memref<8x8xf32, #tpu.memory_space<vmem>>, %arg2: memref<8x2xf32, #tpu.memory_space<vmem>>, %arg3: memref<8x512xf32, #tpu.memory_space<vmem>>, %arg4: memref<1x512xf32, #tpu.memory_space<vmem>>, %arg5: memref<512x384xf32, #tpu.memory_space<vmem>>, %arg6: memref<2x384xf32, #tpu.memory_space<vmem>>, %arg7: memref<1x384xf32, #tpu.memory_space<vmem>>, %arg8: memref<1x384xf32, #tpu.memory_space<vmem>>, %arg9: memref<1x1xf32, #tpu.memory_space<vmem>>, %arg10: memref<8x1xf32, #tpu.memory_space<vmem>>) attributes {dimension_semantics = [#tpu.dimension_semantics<parallel>], iteration_bounds = array<i64: 1>, scalar_prefetch = 0 : i64, scratch_operands = 0 : i64, tpu.core_type = #tpu.core_type<tc>, window_params = [{transform_indices = @transform_0, window_bounds = array<i64: 8, 8>}, {transform_indices = @transform_1, window_bounds = array<i64: 8, 2>}, {pipeline_mode = #tpu.pipeline_mode<synchronous>, transform_indices = @transform_2, window_bounds = array<i64: 8, 512>}, {pipeline_mode = #tpu.pipeline_mode<synchronous>, transform_indices = @transform_3, window_bounds = array<i64: 1, 512>}, {pipeline_mode = #tpu.pipeline_mode<synchronous>, transform_indices = @transform_4, window_bounds = array<i64: 512, 384>}, {pipeline_mode = #tpu.pipeline_mode<synchronous>, transform_indices = @transform_5, window_bounds = array<i64: 2, 384>}, {pipeline_mode = #tpu.pipeline_mode<synchronous>, transform_indices = @transform_6, window_bounds = array<i64: 1, 384>}, {pipeline_mode = #tpu.pipeline_mode<synchronous>, transform_indices = @transform_7, window_bounds = array<i64: 1, 384>}, {pipeline_mode = #tpu.pipeline_mode<synchronous>, transform_indices = @transform_8, window_bounds = array<i64: 1, 1>}, {transform_indices = @transform_9, window_bounds = array<i64: 8, 1>}]} {
    %c0 = arith.constant 0 : index
    %c0_0 = arith.constant 0 : index
    %0 = vector.load %arg1[%c0, %c0_0] : memref<8x8xf32, #tpu.memory_space<vmem>>, vector<8x8xf32>
    %c0_1 = arith.constant 0 : index
    %c0_2 = arith.constant 0 : index
    %1 = vector.load %arg3[%c0_1, %c0_2] : memref<8x512xf32, #tpu.memory_space<vmem>>, vector<8x512xf32>
    %cst = arith.constant dense<0.000000e+00> : vector<8x512xf32>
    %2 = tpu.matmul %0, %1, %cst {dimension_numbers = #tpu.dot_dimension_numbers<[1], [0], [0], [1], [0, 0, 1, 1], [], []>} : vector<8x8xf32>, vector<8x512xf32>, vector<8x512xf32> -> vector<8x512xf32>
    %c0_3 = arith.constant 0 : index
    %c0_4 = arith.constant 0 : index
    %3 = vector.load %arg4[%c0_3, %c0_4] : memref<1x512xf32, #tpu.memory_space<vmem>>, vector<1x512xf32>
    %4 = vector.broadcast %3 : vector<1x512xf32> to vector<8x512xf32>
    %5 = arith.addf %2, %4 : vector<8x512xf32>
    %cst_5 = arith.constant 0.000000e+00 : f32
    %6 = vector.broadcast %cst_5 : f32 to vector<8x512xf32>
    %7 = arith.maximumf %5, %6 : vector<8x512xf32>
    %c0_6 = arith.constant 0 : index
    %c0_7 = arith.constant 0 : index
    %8 = vector.load %arg5[%c0_6, %c0_7] : memref<512x384xf32, #tpu.memory_space<vmem>>, vector<512x384xf32>
    %cst_8 = arith.constant dense<0.000000e+00> : vector<8x384xf32>
    %9 = tpu.matmul %7, %8, %cst_8 {dimension_numbers = #tpu.dot_dimension_numbers<[1], [0], [0], [1], [0, 0, 1, 1], [], []>} : vector<8x512xf32>, vector<512x384xf32>, vector<8x384xf32> -> vector<8x384xf32>
    %c0_9 = arith.constant 0 : index
    %c0_10 = arith.constant 0 : index
    %10 = vector.load %arg2[%c0_9, %c0_10] : memref<8x2xf32, #tpu.memory_space<vmem>>, vector<8x2xf32>
    %c0_11 = arith.constant 0 : index
    %c0_12 = arith.constant 0 : index
    %11 = vector.load %arg6[%c0_11, %c0_12] : memref<2x384xf32, #tpu.memory_space<vmem>>, vector<2x384xf32>
    %cst_13 = arith.constant dense<0.000000e+00> : vector<8x384xf32>
    %12 = tpu.matmul %10, %11, %cst_13 {dimension_numbers = #tpu.dot_dimension_numbers<[1], [0], [0], [1], [0, 0, 1, 1], [], []>} : vector<8x2xf32>, vector<2x384xf32>, vector<8x384xf32> -> vector<8x384xf32>
    %13 = arith.addf %9, %12 : vector<8x384xf32>
    %c0_14 = arith.constant 0 : index
    %c0_15 = arith.constant 0 : index
    %14 = vector.load %arg7[%c0_14, %c0_15] : memref<1x384xf32, #tpu.memory_space<vmem>>, vector<1x384xf32>
    %15 = vector.broadcast %14 : vector<1x384xf32> to vector<8x384xf32>
    %16 = arith.addf %13, %15 : vector<8x384xf32>
    %cst_16 = arith.constant 0.000000e+00 : f32
    %17 = vector.broadcast %cst_16 : f32 to vector<8x384xf32>
    %18 = arith.maximumf %16, %17 : vector<8x384xf32>
    %c0_17 = arith.constant 0 : index
    %c0_18 = arith.constant 0 : index
    %19 = vector.load %arg8[%c0_17, %c0_18] : memref<1x384xf32, #tpu.memory_space<vmem>>, vector<1x384xf32>
    %20 = vector.broadcast %19 : vector<1x384xf32> to vector<8x384xf32>
    %21 = arith.mulf %18, %20 : vector<8x384xf32>
    %cst_19 = arith.constant dense<0.000000e+00> : vector<8xf32>
    %22 = vector.multi_reduction <add>, %21, %cst_19 [1] : vector<8x384xf32> to vector<8xf32>
    %23 = vector.shape_cast %22 : vector<8xf32> to vector<8x1xf32>
    %c0_20 = arith.constant 0 : index
    %c0_21 = arith.constant 0 : index
    %24 = vector.load %arg9[%c0_20, %c0_21] : memref<1x1xf32, #tpu.memory_space<vmem>>, vector<1x1xf32>
    %25 = vector.broadcast %24 : vector<1x1xf32> to vector<8x1xf32>
    %26 = arith.addf %23, %25 : vector<8x1xf32>
    %c0_22 = arith.constant 0 : index
    %c0_23 = arith.constant 0 : index
    %27 = vector.load %arg10[%c0_22, %c0_23] : memref<8x1xf32, #tpu.memory_space<vmem>>, vector<8x1xf32>
    tpu.vector_store %arg10[%c0_22, %c0_23], %26 {strides = array<i32>} : memref<8x1xf32, #tpu.memory_space<vmem>>, vector<8x1xf32>,
    return
  }
  func.func @transform_0(%arg0: i32) -> (i32, i32) {
    %c0_i32 = arith.constant 0 : i32
    %c0_i32_0 = arith.constant 0 : i32
    return %arg0, %c0_i32 : i32, i32
  }
  func.func @transform_1(%arg0: i32) -> (i32, i32) {
    %c0_i32 = arith.constant 0 : i32
    %c0_i32_0 = arith.constant 0 : i32
    return %arg0, %c0_i32 : i32, i32
  }
  func.func @transform_2(%arg0: i32) -> (i32, i32) {
    %c0_i32 = arith.constant 0 : i32
    %c0_i32_0 = arith.constant 0 : i32
    %c0_i32_1 = arith.constant 0 : i32
    return %c0_i32, %c0_i32_0 : i32, i32
  }
  func.func @transform_3(%arg0: i32) -> (i32, i32) {
    %c0_i32 = arith.constant 0 : i32
    %c0_i32_0 = arith.constant 0 : i32
    %c0_i32_1 = arith.constant 0 : i32
    return %c0_i32, %c0_i32_0 : i32, i32
  }
  func.func @transform_4(%arg0: i32) -> (i32, i32) {
    %c0_i32 = arith.constant 0 : i32
    %c0_i32_0 = arith.constant 0 : i32
    %c0_i32_1 = arith.constant 0 : i32
    return %c0_i32, %c0_i32_0 : i32, i32
  }
  func.func @transform_5(%arg0: i32) -> (i32, i32) {
    %c0_i32 = arith.constant 0 : i32
    %c0_i32_0 = arith.constant 0 : i32
    %c0_i32_1 = arith.constant 0 : i32
    return %c0_i32, %c0_i32_0 : i32, i32
  }
  func.func @transform_6(%arg0: i32) -> (i32, i32) {
    %c0_i32 = arith.constant 0 : i32
    %c0_i32_0 = arith.constant 0 : i32
    %c0_i32_1 = arith.constant 0 : i32
    return %c0_i32, %c0_i32_0 : i32, i32
  }
  func.func @transform_7(%arg0: i32) -> (i32, i32) {
    %c0_i32 = arith.constant 0 : i32
    %c0_i32_0 = arith.constant 0 : i32
    %c0_i32_1 = arith.constant 0 : i32
    return %c0_i32, %c0_i32_0 : i32, i32
  }
  func.func @transform_8(%arg0: i32) -> (i32, i32) {
    %c0_i32 = arith.constant 0 : i32
    %c0_i32_0 = arith.constant 0 : i32
    %c0_i32_1 = arith.constant 0 : i32
    return %c0_i32, %c0_i32_0 : i32, i32
  }
  func.func @transform_9(%arg0: i32) -> (i32, i32) {
    %c0_i32 = arith.constant 0 : i32
    %c0_i32_0 = arith.constant 0 : i32
    return %arg0, %c0_i32 : i32, i32
  }
}

</mosaic_0001>

<llo_original>
// kernel: tpu_custom_call.1
$region0: #{tpu_custom_call.1}
  #allocation0 [shape = 'u32[]', space=smem, size = 0x4, offset = 0x4, fixed_abs, tag = 'smem constant byte address 0x4 - core index']
  #allocation1 [shape = 'u32[72,128]{1,0:T(1,128)}', space=vmem, size = 0x9000, scoped, tag = 'internal scratch']
  #allocation2 [shape = 'f32[1,1]{1,0:T(1,128)S(1)}', space=vmem, size = 0x200, scoped, tag = 'scoped memory for tpu_custom_call.1']
  %s0 = inlined_call_operand.vmem [shape: f32[8,8], index: 0, kind: input, shape index: {}]
  %s1 = inlined_call_operand.vmem [shape: f32[8,2], index: 1, kind: input, shape index: {}]
  %s2 = inlined_call_operand.hbm [shape: f32[8,512], index: 2, kind: input, shape index: {}]
  %s3 = inlined_call_operand.hbm [shape: f32[1,512], index: 3, kind: input, shape index: {}]
  %s4 = inlined_call_operand.hbm [shape: f32[512,384], index: 4, kind: input, shape index: {}]
  %s5 = inlined_call_operand.vmem [shape: f32[2,384], index: 5, kind: input, shape index: {}]
  %s6 = inlined_call_operand.vmem [shape: f32[1,384], index: 6, kind: input, shape index: {}]
  %s7 = inlined_call_operand.hbm [shape: f32[1,384], index: 7, kind: input, shape index: {}]
  %s8 = inlined_call_operand.<no memory space> [shape: f32[1,1], index: 8, kind: input, shape index: {}]
  %s9 = inlined_call_operand.vmem [shape: f32[8,1], index: 9, kind: output, shape index: {}]
  %s10 = sld [smem:[#allocation0]]
  $region62: #{tpu_custom_call.1} parent=0
    _
  %s12 = ssub.s32 1, %s10
  %s13 = scalar_select 0, %s12, %s10
  %v14 = vstv %s8
  %15 = vst [vmem:[#allocation2] sm:$0x1] %v14
  $region1: #{tpu_custom_call.1} parent=0
    #allocation3 [shape = 'u8[16384]{0}', space=vmem, size = 0x4000, scoped, tag = 'input window, operand 2, single buffered']
    #allocation4 [shape = 's32[1]{0}', space=sflag, size = 0x4, scoped, tag = 'scoped memory for tpu_custom_call.1']
    #allocation5 [shape = 'u8[2048]{0}', space=vmem, size = 0x800, scoped, tag = 'input window, operand 3, single buffered']
    #allocation6 [shape = 's32[1]{0}', space=sflag, size = 0x4, scoped, tag = 'scoped memory for tpu_custom_call.1']
    #allocation7 [shape = 'u8[786432]{0}', space=vmem, size = 0xc0000, scoped, tag = 'input window, operand 4, single buffered']
    #allocation8 [shape = 'u8[1536]{0}', space=vmem, size = 0x800, scoped, tag = 'input window, operand 7, single buffered']
    #allocation9 [shape = 's32[1]{0}', space=sflag, size = 0x4, scoped, tag = 'scoped memory for tpu_custom_call.1']
    %16 = vsyncpa [#allocation4], 0
    %17 = vsyncpa [#allocation6], 0
    %18 = vsyncpa [#allocation9], 0
    // Predicated region
    $region2: #{tpu_custom_call.1} parent=1 // pred_check
      _
    $region3: #{tpu_custom_call.1} parent=1 // pred_check_branch
      %20 = sbr.rel (0) target = $region5
    $region4: #{tpu_custom_call.1} parent=1 // pred_region
      _
    $region5: #{tpu_custom_call.1} parent=1 // pred_fallthru
      _
    // Predicated region
    $region6: #{tpu_custom_call.1} parent=1 // pred_check
      _
    $region7: #{tpu_custom_call.1} parent=1 // pred_check_branch
      %22 = sbr.rel (0) target = $region9
    $region8: #{tpu_custom_call.1} parent=1 // pred_region
      _
    $region9: #{tpu_custom_call.1} parent=1 // pred_fallthru
      _
    // Predicated region
    $region10: #{tpu_custom_call.1} parent=1 // pred_check
      _
    $region11: #{tpu_custom_call.1} parent=1 // pred_check_branch
      %24 = sbr.rel (0) target = $region13
    $region12: #{tpu_custom_call.1} parent=1 // pred_region
      %26 = vsyncadd [#allocation4], 0
      %s28 = sshll.u32 %s2, 4
      %s29 = int_to_ptr.hbm [resolvable:$true] %s28
      %s30 = sshll.u32 [#allocation3], 4
      %s31 = int_to_ptr.vmem [resolvable:$true] %s30
      %33 = dma.hbm_to_vmem [thread:$0]  %s29, 512, %s31, [#allocation4]
    $region13: #{tpu_custom_call.1} parent=1 // pred_fallthru
      _
    // Predicated region
    $region14: #{tpu_custom_call.1} parent=1 // pred_check
      _
    $region15: #{tpu_custom_call.1} parent=1 // pred_check_branch
      %35 = sbr.rel (0) target = $region17
    $region16: #{tpu_custom_call.1} parent=1 // pred_region
      %37 = vsyncadd [#allocation6], 0
      %s39 = sshll.u32 %s3, 4
      %s40 = int_to_ptr.hbm [resolvable:$true] %s39
      %s41 = sshll.u32 [#allocation5], 4
      %s42 = int_to_ptr.vmem [resolvable:$true] %s41
      %44 = dma.hbm_to_vmem [thread:$0]  %s40, 64, %s42, [#allocation6]
    $region17: #{tpu_custom_call.1} parent=1 // pred_fallthru
      _
    // Predicated region
    $region18: #{tpu_custom_call.1} parent=1 // pred_check
      _
    $region19: #{tpu_custom_call.1} parent=1 // pred_check_branch
      %46 = sbr.rel (0) target = $region21
    $region20: #{tpu_custom_call.1} parent=1 // pred_region
      %48 = vsyncadd [#allocation6], 0
      %s49 = sshll.u32 %s4, 4
      %s50 = int_to_ptr.hbm [resolvable:$true] %s49
      %s51 = sshll.u32 [#allocation7], 4
      %s52 = int_to_ptr.vmem [resolvable:$true] %s51
      %57 = dma.hbm_to_vmem [thread:$0]  %s50, 24576, %s52, [#allocation6], 384, 384, 24
    $region21: #{tpu_custom_call.1} parent=1 // pred_fallthru
      _
    // Predicated region
    $region22: #{tpu_custom_call.1} parent=1 // pred_check
      _
    $region23: #{tpu_custom_call.1} parent=1 // pred_check_branch
      %59 = sbr.rel (0) target = $region25
    $region24: #{tpu_custom_call.1} parent=1 // pred_region
      _
    $region25: #{tpu_custom_call.1} parent=1 // pred_fallthru
      _
    // Predicated region
    $region26: #{tpu_custom_call.1} parent=1 // pred_check
      _
    $region27: #{tpu_custom_call.1} parent=1 // pred_check_branch
      %61 = sbr.rel (0) target = $region29
    $region28: #{tpu_custom_call.1} parent=1 // pred_region
      _
    $region29: #{tpu_custom_call.1} parent=1 // pred_fallthru
      _
    // Predicated region
    $region30: #{tpu_custom_call.1} parent=1 // pred_check
      _
    $region31: #{tpu_custom_call.1} parent=1 // pred_check_branch
      %63 = sbr.rel (0) target = $region33
    $region32: #{tpu_custom_call.1} parent=1 // pred_region
      %65 = vsyncadd [#allocation9], 0
      %s67 = sshll.u32 %s7, 4
      %s68 = int_to_ptr.hbm [resolvable:$true] %s67
      %s69 = sshll.u32 [#allocation8], 4
      %s70 = int_to_ptr.vmem [resolvable:$true] %s69
      %72 = dma.hbm_to_vmem [thread:$0]  %s68, 48, %s70, [#allocation9]
    $region33: #{tpu_custom_call.1} parent=1 // pred_fallthru
      _
    // Predicated region
    $region34: #{tpu_custom_call.1} parent=1 // pred_check
      _
    $region35: #{tpu_custom_call.1} parent=1 // pred_check_branch
      %74 = sbr.rel (0) target = $region37
    $region36: #{tpu_custom_call.1} parent=1 // pred_region
      _
    $region37: #{tpu_custom_call.1} parent=1 // pred_fallthru
      _
    // Predicated region
    $region38: #{tpu_custom_call.1} parent=1 // pred_check
      _
    $region39: #{tpu_custom_call.1} parent=1 // pred_check_branch
      %76 = sbr.rel (0) target = $region41
    $region40: #{tpu_custom_call.1} parent=1 // pred_region
      %78 = dma.done [#allocation4], 512
    $region41: #{tpu_custom_call.1} parent=1 // pred_fallthru
      _
    // Predicated region
    $region42: #{tpu_custom_call.1} parent=1 // pred_check
      _
    $region43: #{tpu_custom_call.1} parent=1 // pred_check_branch
      %80 = sbr.rel (0) target = $region45
    $region44: #{tpu_custom_call.1} parent=1 // pred_region
      %82 = dma.done [#allocation6], 64
    $region45: #{tpu_custom_call.1} parent=1 // pred_fallthru
      _
    // Predicated region
    $region46: #{tpu_custom_call.1} parent=1 // pred_check
      _
    $region47: #{tpu_custom_call.1} parent=1 // pred_check_branch
      %84 = sbr.rel (0) target = $region49
    $region48: #{tpu_custom_call.1} parent=1 // pred_region
      %86 = dma.done [#allocation6], 24576
    $region49: #{tpu_custom_call.1} parent=1 // pred_fallthru
      _
    // Predicated region
    $region50: #{tpu_custom_call.1} parent=1 // pred_check
      _
    $region51: #{tpu_custom_call.1} parent=1 // pred_check_branch
      %88 = sbr.rel (0) target = $region53
    $region52: #{tpu_custom_call.1} parent=1 // pred_region
      %90 = dma.done [#allocation9], 48
    $region53: #{tpu_custom_call.1} parent=1 // pred_fallthru
      _
    %v91 = vld [vmem:[%s0] sm:$0xff]
    %v92 = vld [vmem:[#allocation3] sm:$0xff]
    %v93 = vld [vmem:[#allocation3 + $0x8] sm:$0xff]
    %v94 = vld [vmem:[#allocation3 + $0x10] sm:$0xff]
    %v95 = vld [vmem:[#allocation3 + $0x18] sm:$0xff]
    %v96 = vld [vmem:[#allocation5] sm:$0xf]
    %v98 = vperm.slane %v96, 0
    %v99 = vperm.slane %v96, 1
    %v100 = vperm.slane %v96, 2
    %v101 = vperm.slane %v96, 3
    %vm106 = vcmask 64512
    %v108 = vsel %vm106, %v91, 0
    %110 = vmatpush.msra.mxu0 0.0
    %111 = vmatpush.msra.mxu0 0.0
    %112 = vmatpush.msra.mxu0 0.0
    %113 = vmatpush.msra.mxu0 0.0
    %114 = vmatpush.msra.mxu0 0.0
    %115 = vmatpush.msra.mxu0 0.0
    %116 = vmatpush.msra.mxu0 0.0
    %117 = vmatpush.msra.mxu0 0.0
    %118 = vmatpush.msra.mxu0 0.0
    %119 = vmatpush.msra.mxu0 0.0
    %120 = vmatpush.msra.mxu0 0.0
    %121 = vmatpush.msra.mxu0 0.0
    %122 = vmatpush.msra.mxu0 0.0
    %123 = vmatpush.msra.mxu0 0.0
    %124 = vmatpush.msra.mxu0 0.0
    %125 = vmatpush.msra.mxu0 %v92
    %126 = vmatmul.f32.gmra.mxu0 %v108
    %v127 = vpop.f32.mrf.mxu0
    %v128 = vadd.f32 %v98, %v127
    %129 = vdwg.mxu0
    %130 = vmatpush.msra.mxu0 0.0
    %131 = vmatpush.msra.mxu0 0.0
    %132 = vmatpush.msra.mxu0 0.0
    %133 = vmatpush.msra.mxu0 0.0
    %134 = vmatpush.msra.mxu0 0.0
    %135 = vmatpush.msra.mxu0 0.0
    %136 = vmatpush.msra.mxu0 0.0
    %137 = vmatpush.msra.mxu0 0.0
    %138 = vmatpush.msra.mxu0 0.0
    %139 = vmatpush.msra.mxu0 0.0
    %140 = vmatpush.msra.mxu0 0.0
    %141 = vmatpush.msra.mxu0 0.0
    %142 = vmatpush.msra.mxu0 0.0
    %143 = vmatpush.msra.mxu0 0.0
    %144 = vmatpush.msra.mxu0 0.0
    %145 = vmatpush.msra.mxu0 %v93
    %146 = vmatmul.f32.gmra.mxu0 %v108
    %v147 = vpop.f32.mrf.mxu0
    %v148 = vadd.f32 %v99, %v147
    %149 = vdwg.mxu0
    %150 = vmatpush.msra.mxu0 0.0
    %151 = vmatpush.msra.mxu0 0.0
    %152 = vmatpush.msra.mxu0 0.0
    %153 = vmatpush.msra.mxu0 0.0
    %154 = vmatpush.msra.mxu0 0.0
    %155 = vmatpush.msra.mxu0 0.0
    %156 = vmatpush.msra.mxu0 0.0
    %157 = vmatpush.msra.mxu0 0.0
    %158 = vmatpush.msra.mxu0 0.0
    %159 = vmatpush.msra.mxu0 0.0
    %160 = vmatpush.msra.mxu0 0.0
    %161 = vmatpush.msra.mxu0 0.0
    %162 = vmatpush.msra.mxu0 0.0
    %163 = vmatpush.msra.mxu0 0.0
    %164 = vmatpush.msra.mxu0 0.0
    %165 = vmatpush.msra.mxu0 %v94
    %166 = vmatmul.f32.gmra.mxu0 %v108
    %v167 = vpop.f32.mrf.mxu0
    %v168 = vadd.f32 %v100, %v167
    %169 = vdwg.mxu0
    %170 = vmatpush.msra.mxu0 0.0
    %171 = vmatpush.msra.mxu0 0.0
    %172 = vmatpush.msra.mxu0 0.0
    %173 = vmatpush.msra.mxu0 0.0
    %174 = vmatpush.msra.mxu0 0.0
    %175 = vmatpush.msra.mxu0 0.0
    %176 = vmatpush.msra.mxu0 0.0
    %177 = vmatpush.msra.mxu0 0.0
    %178 = vmatpush.msra.mxu0 0.0
    %179 = vmatpush.msra.mxu0 0.0
    %180 = vmatpush.msra.mxu0 0.0
    %181 = vmatpush.msra.mxu0 0.0
    %182 = vmatpush.msra.mxu0 0.0
    %183 = vmatpush.msra.mxu0 0.0
    %184 = vmatpush.msra.mxu0 0.0
    %185 = vmatpush.msra.mxu0 %v95
    %186 = vmatmul.f32.gmra.mxu0 %v108
    %v187 = vpop.f32.mrf.mxu0
    %v188 = vadd.f32 %v101, %v187
    %189 = vdwg.mxu0
    %v190 = vmax.f32 %v128, 0.0
    %v191 = vmax.f32 %v148, 0.0
    %v192 = vmax.f32 %v168, 0.0
    %v193 = vmax.f32 %v188, 0.0
    %v194 = vld [vmem:[#allocation7] sm:$0xff]
    %v195 = vld [vmem:[#allocation7 + $0x8] sm:$0xff]
    %v196 = vld [vmem:[#allocation7 + $0x10] sm:$0xff]
    %v197 = vld [vmem:[#allocation7 + $0x18] sm:$0xff]
    %v198 = vld [vmem:[#allocation7 + $0x20] sm:$0xff]
    %v199 = vld [vmem:[#allocation7 + $0x28] sm:$0xff]
    %v200 = vld [vmem:[#allocation7 + $0x30] sm:$0xff]
    %v201 = vld [vmem:[#allocation7 + $0x38] sm:$0xff]
    %v202 = vld [vmem:[#allocation7 + $0x40] sm:$0xff]
    %v203 = vld [vmem:[#allocation7 + $0x48] sm:$0xff]
    %v204 = vld [vmem:[#allocation7 + $0x50] sm:$0xff]
    %v205 = vld [vmem:[#allocation7 + $0x58] sm:$0xff]
    %v206 = vld [vmem:[#allocation7 + $0x60] sm:$0xff]
    %v207 = vld [vmem:[#allocation7 + $0x68] sm:$0xff]
    %v208 = vld [vmem:[#allocation7 + $0x70] sm:$0xff]
    %v209 = vld [vmem:[#allocation7 + $0x78] sm:$0xff]
    %v210 = vld [vmem:[#allocation7 + $0x80] sm:$0xff]
    %v211 = vld [vmem:[#allocation7 + $0x88] sm:$0xff]
    %v212 = vld [vmem:[#allocation7 + $0x90] sm:$0xff]
    %v213 = vld [vmem:[#allocation7 + $0x98] sm:$0xff]
    %v214 = vld [vmem:[#allocation7 + $0xa0] sm:$0xff]
    %v215 = vld [vmem:[#allocation7 + $0xa8] sm:$0xff]
    %v216 = vld [vmem:[#allocation7 + $0xb0] sm:$0xff]
    %v217 = vld [vmem:[#allocation7 + $0xb8] sm:$0xff]
    %v218 = vld [vmem:[#allocation7 + $0xc0] sm:$0xff]
    %v219 = vld [vmem:[#allocation7 + $0xc8] sm:$0xff]
    %v220 = vld [vmem:[#allocation7 + $0xd0] sm:$0xff]
    %v221 = vld [vmem:[#allocation7 + $0xd8] sm:$0xff]
    %v222 = vld [vmem:[#allocation7 + $0xe0] sm:$0xff]
    %v223 = vld [vmem:[#allocation7 + $0xe8] sm:$0xff]
    %v224 = vld [vmem:[#allocation7 + $0xf0] sm:$0xff]
    %v225 = vld [vmem:[#allocation7 + $0xf8] sm:$0xff]
    %v226 = vld [vmem:[#allocation7 + $0x100] sm:$0xff]
    %v227 = vld [vmem:[#allocation7 + $0x108] sm:$0xff]
    %v228 = vld [vmem:[#allocation7 + $0x110] sm:$0xff]
    %v229 = vld [vmem:[#allocation7 + $0x118] sm:$0xff]
    %v230 = vld [vmem:[#allocation7 + $0x120] sm:$0xff]
    %v231 = vld [vmem:[#allocation7 + $0x128] sm:$0xff]
    %v232 = vld [vmem:[#allocation7 + $0x130] sm:$0xff]
    %v233 = vld [vmem:[#allocation7 + $0x138] sm:$0xff]
    %v234 = vld [vmem:[#allocation7 + $0x140] sm:$0xff]
    %v235 = vld [vmem:[#allocation7 + $0x148] sm:$0xff]
    %v236 = vld [vmem:[#allocation7 + $0x150] sm:$0xff]
    %v237 = vld [vmem:[#allocation7 + $0x158] sm:$0xff]
    %v238 = vld [vmem:[#allocation7 + $0x160] sm:$0xff]
    %v239 = vld [vmem:[#allocation7 + $0x168] sm:$0xff]
    %v240 = vld [vmem:[#allocation7 + $0x170] sm:$0xff]
    %v241 = vld [vmem:[#allocation7 + $0x178] sm:$0xff]
    %v242 = vld [vmem:[#allocation7 + $0x180] sm:$0xff]
    %v243 = vld [vmem:[#allocation7 + $0x188] sm:$0xff]
    %v244 = vld [vmem:[#allocation7 + $0x190] sm:$0xff]
    %v245 = vld [vmem:[#allocation7 + $0x198] sm:$0xff]
    %v246 = vld [vmem:[#allocation7 + $0x1a0] sm:$0xff]
    %v247 = vld [vmem:[#allocation7 + $0x1a8] sm:$0xff]
    %v248 = vld [vmem:[#allocation7 + $0x1b0] sm:$0xff]
    %v249 = vld [vmem:[#allocation7 + $0x1b8] sm:$0xff]
    %v250 = vld [vmem:[#allocation7 + $0x1c0] sm:$0xff]
    %v251 = vld [vmem:[#allocation7 + $0x1c8] sm:$0xff]
    %v252 = vld [vmem:[#allocation7 + $0x1d0] sm:$0xff]
    %v253 = vld [vmem:[#allocation7 + $0x1d8] sm:$0xff]
    %v254 = vld [vmem:[#allocation7 + $0x1e0] sm:$0xff]
    %v255 = vld [vmem:[#allocation7 + $0x1e8] sm:$0xff]
    %v256 = vld [vmem:[#allocation7 + $0x1f0] sm:$0xff]
    %v257 = vld [vmem:[#allocation7 + $0x1f8] sm:$0xff]
    %v258 = vld [vmem:[#allocation7 + $0x200] sm:$0xff]
    %v259 = vld [vmem:[#allocation7 + $0x208] sm:$0xff]
    %v260 = vld [vmem:[#allocation7 + $0x210] sm:$0xff]
    %v261 = vld [vmem:[#allocation7 + $0x218] sm:$0xff]
    %v262 = vld [vmem:[#allocation7 + $0x220] sm:$0xff]
    %v263 = vld [vmem:[#allocation7 + $0x228] sm:$0xff]
    %v264 = vld [vmem:[#allocation7 + $0x230] sm:$0xff]
    %v265 = vld [vmem:[#allocation7 + $0x238] sm:$0xff]
    %v266 = vld [vmem:[#allocation7 + $0x240] sm:$0xff]
    %v267 = vld [vmem:[#allocation7 + $0x248] sm:$0xff]
    %v268 = vld [vmem:[#allocation7 + $0x250] sm:$0xff]
    %v269 = vld [vmem:[#allocation7 + $0x258] sm:$0xff]
    %v270 = vld [vmem:[#allocation7 + $0x260] sm:$0xff]
    %v271 = vld [vmem:[#allocation7 + $0x268] sm:$0xff]
    %v272 = vld [vmem:[#allocation7 + $0x270] sm:$0xff]
    %v273 = vld [vmem:[#allocation7 + $0x278] sm:$0xff]
    %v274 = vld [vmem:[#allocation7 + $0x280] sm:$0xff]
    %v275 = vld [vmem:[#allocation7 + $0x288] sm:$0xff]
    %v276 = vld [vmem:[#allocation7 + $0x290] sm:$0xff]
    %v277 = vld [vmem:[#allocation7 + $0x298] sm:$0xff]
    %v278 = vld [vmem:[#allocation7 + $0x2a0] sm:$0xff]
    %v279 = vld [vmem:[#allocation7 + $0x2a8] sm:$0xff]
    %v280 = vld [vmem:[#allocation7 + $0x2b0] sm:$0xff]
    %v281 = vld [vmem:[#allocation7 + $0x2b8] sm:$0xff]
    %v282 = vld [vmem:[#allocation7 + $0x2c0] sm:$0xff]
    %v283 = vld [vmem:[#allocation7 + $0x2c8] sm:$0xff]
    %v284 = vld [vmem:[#allocation7 + $0x2d0] sm:$0xff]
    %v285 = vld [vmem:[#allocation7 + $0x2d8] sm:$0xff]
    %v286 = vld [vmem:[#allocation7 + $0x2e0] sm:$0xff]
    %v287 = vld [vmem:[#allocation7 + $0x2e8] sm:$0xff]
    %v288 = vld [vmem:[#allocation7 + $0x2f0] sm:$0xff]
    %v289 = vld [vmem:[#allocation7 + $0x2f8] sm:$0xff]
    %v290 = vld [vmem:[#allocation7 + $0x300] sm:$0xff]
    %v291 = vld [vmem:[#allocation7 + $0x308] sm:$0xff]
    %v292 = vld [vmem:[#allocation7 + $0x310] sm:$0xff]
    %v293 = vld [vmem:[#allocation7 + $0x318] sm:$0xff]
    %v294 = vld [vmem:[#allocation7 + $0x320] sm:$0xff]
    %v295 = vld [vmem:[#allocation7 + $0x328] sm:$0xff]
    %v296 = vld [vmem:[#allocation7 + $0x330] sm:$0xff]
    %v297 = vld [vmem:[#allocation7 + $0x338] sm:$0xff]
    %v298 = vld [vmem:[#allocation7 + $0x340] sm:$0xff]
    %v299 = vld [vmem:[#allocation7 + $0x348] sm:$0xff]
    %v300 = vld [vmem:[#allocation7 + $0x350] sm:$0xff]
    %v301 = vld [vmem:[#allocation7 + $0x358] sm:$0xff]
    %v302 = vld [vmem:[#allocation7 + $0x360] sm:$0xff]
    %v303 = vld [vmem:[#allocation7 + $0x368] sm:$0xff]
    %v304 = vld [vmem:[#allocation7 + $0x370] sm:$0xff]
    %v305 = vld [vmem:[#allocation7 + $0x378] sm:$0xff]
    %v306 = vld [vmem:[#allocation7 + $0x380] sm:$0xff]
    %v307 = vld [vmem:[#allocation7 + $0x388] sm:$0xff]
    %v308 = vld [vmem:[#allocation7 + $0x390] sm:$0xff]
    %v309 = vld [vmem:[#allocation7 + $0x398] sm:$0xff]
    %v310 = vld [vmem:[#allocation7 + $0x3a0] sm:$0xff]
    %v311 = vld [vmem:[#allocation7 + $0x3a8] sm:$0xff]
    %v312 = vld [vmem:[#allocation7 + $0x3b0] sm:$0xff]
    %v313 = vld [vmem:[#allocation7 + $0x3b8] sm:$0xff]
    %v314 = vld [vmem:[#allocation7 + $0x3c0] sm:$0xff]
    %v315 = vld [vmem:[#allocation7 + $0x3c8] sm:$0xff]
    %v316 = vld [vmem:[#allocation7 + $0x3d0] sm:$0xff]
    %v317 = vld [vmem:[#allocation7 + $0x3d8] sm:$0xff]
    %v318 = vld [vmem:[#allocation7 + $0x3e0] sm:$0xff]
    %v319 = vld [vmem:[#allocation7 + $0x3e8] sm:$0xff]
    %v320 = vld [vmem:[#allocation7 + $0x3f0] sm:$0xff]
    %v321 = vld [vmem:[#allocation7 + $0x3f8] sm:$0xff]
    %v322 = vld [vmem:[#allocation7 + $0x400] sm:$0xff]
    %v323 = vld [vmem:[#allocation7 + $0x408] sm:$0xff]
    %v324 = vld [vmem:[#allocation7 + $0x410] sm:$0xff]
    %v325 = vld [vmem:[#allocation7 + $0x418] sm:$0xff]
    %v326 = vld [vmem:[#allocation7 + $0x420] sm:$0xff]
    %v327 = vld [vmem:[#allocation7 + $0x428] sm:$0xff]
    %v328 = vld [vmem:[#allocation7 + $0x430] sm:$0xff]
    %v329 = vld [vmem:[#allocation7 + $0x438] sm:$0xff]
    %v330 = vld [vmem:[#allocation7 + $0x440] sm:$0xff]
    %v331 = vld [vmem:[#allocation7 + $0x448] sm:$0xff]
    %v332 = vld [vmem:[#allocation7 + $0x450] sm:$0xff]
    %v333 = vld [vmem:[#allocation7 + $0x458] sm:$0xff]
    %v334 = vld [vmem:[#allocation7 + $0x460] sm:$0xff]
    %v335 = vld [vmem:[#allocation7 + $0x468] sm:$0xff]
    %v336 = vld [vmem:[#allocation7 + $0x470] sm:$0xff]
    %v337 = vld [vmem:[#allocation7 + $0x478] sm:$0xff]
    %v338 = vld [vmem:[#allocation7 + $0x480] sm:$0xff]
    %v339 = vld [vmem:[#allocation7 + $0x488] sm:$0xff]
    %v340 = vld [vmem:[#allocation7 + $0x490] sm:$0xff]
    %v341 = vld [vmem:[#allocation7 + $0x498] sm:$0xff]
    %v342 = vld [vmem:[#allocation7 + $0x4a0] sm:$0xff]
    %v343 = vld [vmem:[#allocation7 + $0x4a8] sm:$0xff]
    %v344 = vld [vmem:[#allocation7 + $0x4b0] sm:$0xff]
    %v345 = vld [vmem:[#allocation7 + $0x4b8] sm:$0xff]
    %v346 = vld [vmem:[#allocation7 + $0x4c0] sm:$0xff]
    %v347 = vld [vmem:[#allocation7 + $0x4c8] sm:$0xff]
    %v348 = vld [vmem:[#allocation7 + $0x4d0] sm:$0xff]
    %v349 = vld [vmem:[#allocation7 + $0x4d8] sm:$0xff]
    %v350 = vld [vmem:[#allocation7 + $0x4e0] sm:$0xff]
    %v351 = vld [vmem:[#allocation7 + $0x4e8] sm:$0xff]
    %v352 = vld [vmem:[#allocation7 + $0x4f0] sm:$0xff]
    %v353 = vld [vmem:[#allocation7 + $0x4f8] sm:$0xff]
    %v354 = vld [vmem:[#allocation7 + $0x500] sm:$0xff]
    %v355 = vld [vmem:[#allocation7 + $0x508] sm:$0xff]
    %v356 = vld [vmem:[#allocation7 + $0x510] sm:$0xff]
    %v357 = vld [vmem:[#allocation7 + $0x518] sm:$0xff]
    %v358 = vld [vmem:[#allocation7 + $0x520] sm:$0xff]
    %v359 = vld [vmem:[#allocation7 + $0x528] sm:$0xff]
    %v360 = vld [vmem:[#allocation7 + $0x530] sm:$0xff]
    %v361 = vld [vmem:[#allocation7 + $0x538] sm:$0xff]
    %v362 = vld [vmem:[#allocation7 + $0x540] sm:$0xff]
    %v363 = vld [vmem:[#allocation7 + $0x548] sm:$0xff]
    %v364 = vld [vmem:[#allocation7 + $0x550] sm:$0xff]
    %v365 = vld [vmem:[#allocation7 + $0x558] sm:$0xff]
    %v366 = vld [vmem:[#allocation7 + $0x560] sm:$0xff]
    %v367 = vld [vmem:[#allocation7 + $0x568] sm:$0xff]
    %v368 = vld [vmem:[#allocation7 + $0x570] sm:$0xff]
    %v369 = vld [vmem:[#allocation7 + $0x578] sm:$0xff]
    %v370 = vld [vmem:[#allocation7 + $0x580] sm:$0xff]
    %v371 = vld [vmem:[#allocation7 + $0x588] sm:$0xff]
    %v372 = vld [vmem:[#allocation7 + $0x590] sm:$0xff]
    %v373 = vld [vmem:[#allocation7 + $0x598] sm:$0xff]
    %v374 = vld [vmem:[#allocation7 + $0x5a0] sm:$0xff]
    %v375 = vld [vmem:[#allocation7 + $0x5a8] sm:$0xff]
    %v376 = vld [vmem:[#allocation7 + $0x5b0] sm:$0xff]
    %v377 = vld [vmem:[#allocation7 + $0x5b8] sm:$0xff]
    %v378 = vld [vmem:[#allocation7 + $0x5c0] sm:$0xff]
    %v379 = vld [vmem:[#allocation7 + $0x5c8] sm:$0xff]
    %v380 = vld [vmem:[#allocation7 + $0x5d0] sm:$0xff]
    %v381 = vld [vmem:[#allocation7 + $0x5d8] sm:$0xff]
    %v382 = vld [vmem:[#allocation7 + $0x5e0] sm:$0xff]
    %v383 = vld [vmem:[#allocation7 + $0x5e8] sm:$0xff]
    %v384 = vld [vmem:[#allocation7 + $0x5f0] sm:$0xff]
    %v385 = vld [vmem:[#allocation7 + $0x5f8] sm:$0xff]
    %v386 = vld [vmem:[%s1] sm:$0xff]
    %v387 = vld [vmem:[%s5] sm:$0x3f]
    %389 = vst [vmem:[#allocation1] ss:$4 sm:$0xff] %v387
    %v390 = vld.sshfl [vmem:[#allocation1] sm:$0xff pattern:$0x73625140]
    %v391 = vld.sshfl [vmem:[#allocation1 + $0x8] sm:$0xff pattern:$0x73625140]
    %v392 = vld.sshfl [vmem:[#allocation1 + $0x10] sm:$0xff pattern:$0x73625140]
    %vm393 = vcmask 15360
    %v395 = vsel %vm393, %v386, 0
    %vm397 = vcmask 1041408
    %v398 = vsel %vm397, %v390, 0
    %v400 = vsel %vm397, %v391, 0
    %v402 = vsel %vm397, %v392, 0
    %404 = vmatpush.msra.mxu0 0.0
    %405 = vmatpush.msra.mxu0 0.0
    %406 = vmatpush.msra.mxu0 0.0
    %407 = vmatpush.msra.mxu0 0.0
    %408 = vmatpush.msra.mxu0 0.0
    %409 = vmatpush.msra.mxu0 0.0
    %410 = vmatpush.msra.mxu0 0.0
    %411 = vmatpush.msra.mxu0 0.0
    %412 = vmatpush.msra.mxu0 0.0
    %413 = vmatpush.msra.mxu0 0.0
    %414 = vmatpush.msra.mxu0 0.0
    %415 = vmatpush.msra.mxu0 0.0
    %416 = vmatpush.msra.mxu0 0.0
    %417 = vmatpush.msra.mxu0 0.0
    %418 = vmatpush.msra.mxu0 0.0
    %419 = vmatpush.msra.mxu0 %v398
    %420 = vmatmul.f32.gmra.mxu0 %v395
    %v421 = vpop.f32.mrf.mxu0
    %v422 = vadd.f32 0.0, %v421
    %423 = vdwg.mxu0
    %424 = vmatpush.msra.mxu0 0.0
    %425 = vmatpush.msra.mxu0 0.0
    %426 = vmatpush.msra.mxu0 0.0
    %427 = vmatpush.msra.mxu0 0.0
    %428 = vmatpush.msra.mxu0 0.0
    %429 = vmatpush.msra.mxu0 0.0
    %430 = vmatpush.msra.mxu0 0.0
    %431 = vmatpush.msra.mxu0 0.0
    %432 = vmatpush.msra.mxu0 0.0
    %433 = vmatpush.msra.mxu0 0.0
    %434 = vmatpush.msra.mxu0 0.0
    %435 = vmatpush.msra.mxu0 0.0
    %436 = vmatpush.msra.mxu0 0.0
    %437 = vmatpush.msra.mxu0 0.0
    %438 = vmatpush.msra.mxu0 0.0
    %439 = vmatpush.msra.mxu0 %v400
    %440 = vmatmul.f32.gmra.mxu0 %v395
    %v441 = vpop.f32.mrf.mxu0
    %v442 = vadd.f32 0.0, %v441
    %443 = vdwg.mxu0
    %444 = vmatpush.msra.mxu0 0.0
    %445 = vmatpush.msra.mxu0 0.0
    %446 = vmatpush.msra.mxu0 0.0
    %447 = vmatpush.msra.mxu0 0.0
    %448 = vmatpush.msra.mxu0 0.0
    %449 = vmatpush.msra.mxu0 0.0
    %450 = vmatpush.msra.mxu0 0.0
    %451 = vmatpush.msra.mxu0 0.0
    %452 = vmatpush.msra.mxu0 0.0
    %453 = vmatpush.msra.mxu0 0.0
    %454 = vmatpush.msra.mxu0 0.0
    %455 = vmatpush.msra.mxu0 0.0
    %456 = vmatpush.msra.mxu0 0.0
    %457 = vmatpush.msra.mxu0 0.0
    %458 = vmatpush.msra.mxu0 0.0
    %459 = vmatpush.msra.mxu0 %v402
    %460 = vmatmul.f32.gmra.mxu0 %v395
    %v461 = vpop.f32.mrf.mxu0
    %v462 = vadd.f32 0.0, %v461
    %463 = vdwg.mxu0
    %464 = vmatpush.msra.mxu0 %v239
    %465 = vmatpush.msra.mxu0 %v236
    %466 = vmatpush.msra.mxu0 %v233
    %467 = vmatpush.msra.mxu0 %v230
    %468 = vmatpush.msra.mxu0 %v227
    %469 = vmatpush.msra.mxu0 %v224
    %470 = vmatpush.msra.mxu0 %v221
    %471 = vmatpush.msra.mxu0 %v218
    %472 = vmatpush.msra.mxu0 %v215
    %473 = vmatpush.msra.mxu0 %v212
    %474 = vmatpush.msra.mxu0 %v209
    %475 = vmatpush.msra.mxu0 %v206
    %476 = vmatpush.msra.mxu0 %v203
    %477 = vmatpush.msra.mxu0 %v200
    %478 = vmatpush.msra.mxu0 %v197
    %479 = vmatpush.msra.mxu0 %v194
    %480 = vmatmul.f32.gmra.mxu0 %v190
    %v481 = vpop.f32.mrf.mxu0
    %v482 = vadd.f32 %v422, %v481
    %483 = vdwg.mxu0
    %484 = vmatpush.msra.mxu0 %v287
    %485 = vmatpush.msra.mxu0 %v284
    %486 = vmatpush.msra.mxu0 %v281
    %487 = vmatpush.msra.mxu0 %v278
    %488 = vmatpush.msra.mxu0 %v275
    %489 = vmatpush.msra.mxu0 %v272
    %490 = vmatpush.msra.mxu0 %v269
    %491 = vmatpush.msra.mxu0 %v266
    %492 = vmatpush.msra.mxu0 %v263
    %493 = vmatpush.msra.mxu0 %v260
    %494 = vmatpush.msra.mxu0 %v257
    %495 = vmatpush.msra.mxu0 %v254
    %496 = vmatpush.msra.mxu0 %v251
    %497 = vmatpush.msra.mxu0 %v248
    %498 = vmatpush.msra.mxu0 %v245
    %499 = vmatpush.msra.mxu0 %v242
    %500 = vmatmul.f32.gmra.mxu0 %v191
    %v501 = vpop.f32.mrf.mxu0
    %v502 = vadd.f32 %v482, %v501
    %503 = vdwg.mxu0
    %504 = vmatpush.msra.mxu0 %v335
    %505 = vmatpush.msra.mxu0 %v332
    %506 = vmatpush.msra.mxu0 %v329
    %507 = vmatpush.msra.mxu0 %v326
    %508 = vmatpush.msra.mxu0 %v323
    %509 = vmatpush.msra.mxu0 %v320
    %510 = vmatpush.msra.mxu0 %v317
    %511 = vmatpush.msra.mxu0 %v314
    %512 = vmatpush.msra.mxu0 %v311
    %513 = vmatpush.msra.mxu0 %v308
    %514 = vmatpush.msra.mxu0 %v305
    %515 = vmatpush.msra.mxu0 %v302
    %516 = vmatpush.msra.mxu0 %v299
    %517 = vmatpush.msra.mxu0 %v296
    %518 = vmatpush.msra.mxu0 %v293
    %519 = vmatpush.msra.mxu0 %v290
    %520 = vmatmul.f32.gmra.mxu0 %v192
    %v521 = vpop.f32.mrf.mxu0
    %v522 = vadd.f32 %v502, %v521
    %523 = vdwg.mxu0
    %524 = vmatpush.msra.mxu0 %v383
    %525 = vmatpush.msra.mxu0 %v380
    %526 = vmatpush.msra.mxu0 %v377
    %527 = vmatpush.msra.mxu0 %v374
    %528 = vmatpush.msra.mxu0 %v371
    %529 = vmatpush.msra.mxu0 %v368
    %530 = vmatpush.msra.mxu0 %v365
    %531 = vmatpush.msra.mxu0 %v362
    %532 = vmatpush.msra.mxu0 %v359
    %533 = vmatpush.msra.mxu0 %v356
    %534 = vmatpush.msra.mxu0 %v353
    %535 = vmatpush.msra.mxu0 %v350
    %536 = vmatpush.msra.mxu0 %v347
    %537 = vmatpush.msra.mxu0 %v344
    %538 = vmatpush.msra.mxu0 %v341
    %539 = vmatpush.msra.mxu0 %v338
    %540 = vmatmul.f32.gmra.mxu0 %v193
    %v541 = vpop.f32.mrf.mxu0
    %v542 = vadd.f32 %v522, %v541
    %543 = vdwg.mxu0
    %544 = vmatpush.msra.mxu0 %v240
    %545 = vmatpush.msra.mxu0 %v237
    %546 = vmatpush.msra.mxu0 %v234
    %547 = vmatpush.msra.mxu0 %v231
    %548 = vmatpush.msra.mxu0 %v228
    %549 = vmatpush.msra.mxu0 %v225
    %550 = vmatpush.msra.mxu0 %v222
    %551 = vmatpush.msra.mxu0 %v219
    %552 = vmatpush.msra.mxu0 %v216
    %553 = vmatpush.msra.mxu0 %v213
    %554 = vmatpush.msra.mxu0 %v210
    %555 = vmatpush.msra.mxu0 %v207
    %556 = vmatpush.msra.mxu0 %v204
    %557 = vmatpush.msra.mxu0 %v201
    %558 = vmatpush.msra.mxu0 %v198
    %559 = vmatpush.msra.mxu0 %v195
    %560 = vmatmul.f32.gmra.mxu0 %v190
    %v561 = vpop.f32.mrf.mxu0
    %v562 = vadd.f32 %v442, %v561
    %563 = vdwg.mxu0
    %564 = vmatpush.msra.mxu0 %v288
    %565 = vmatpush.msra.mxu0 %v285
    %566 = vmatpush.msra.mxu0 %v282
    %567 = vmatpush.msra.mxu0 %v279
    %568 = vmatpush.msra.mxu0 %v276
    %569 = vmatpush.msra.mxu0 %v273
    %570 = vmatpush.msra.mxu0 %v270
    %571 = vmatpush.msra.mxu0 %v267
    %572 = vmatpush.msra.mxu0 %v264
    %573 = vmatpush.msra.mxu0 %v261
    %574 = vmatpush.msra.mxu0 %v258
    %575 = vmatpush.msra.mxu0 %v255
    %576 = vmatpush.msra.mxu0 %v252
    %577 = vmatpush.msra.mxu0 %v249
    %578 = vmatpush.msra.mxu0 %v246
    %579 = vmatpush.msra.mxu0 %v243
    %580 = vmatmul.f32.gmra.mxu0 %v191
    %v581 = vpop.f32.mrf.mxu0
    %v582 = vadd.f32 %v562, %v581
    %583 = vdwg.mxu0
    %584 = vmatpush.msra.mxu0 %v336
    %585 = vmatpush.msra.mxu0 %v333
    %586 = vmatpush.msra.mxu0 %v330
    %587 = vmatpush.msra.mxu0 %v327
    %588 = vmatpush.msra.mxu0 %v324
    %589 = vmatpush.msra.mxu0 %v321
    %590 = vmatpush.msra.mxu0 %v318
    %591 = vmatpush.msra.mxu0 %v315
    %592 = vmatpush.msra.mxu0 %v312
    %593 = vmatpush.msra.mxu0 %v309
    %594 = vmatpush.msra.mxu0 %v306
    %595 = vmatpush.msra.mxu0 %v303
    %596 = vmatpush.msra.mxu0 %v300
    %597 = vmatpush.msra.mxu0 %v297
    %598 = vmatpush.msra.mxu0 %v294
    %599 = vmatpush.msra.mxu0 %v291
    %600 = vmatmul.f32.gmra.mxu0 %v192
    %v601 = vpop.f32.mrf.mxu0
    %v602 = vadd.f32 %v582, %v601
    %603 = vdwg.mxu0
    %604 = vmatpush.msra.mxu0 %v384
    %605 = vmatpush.msra.mxu0 %v381
    %606 = vmatpush.msra.mxu0 %v378
    %607 = vmatpush.msra.mxu0 %v375
    %608 = vmatpush.msra.mxu0 %v372
    %609 = vmatpush.msra.mxu0 %v369
    %610 = vmatpush.msra.mxu0 %v366
    %611 = vmatpush.msra.mxu0 %v363
    %612 = vmatpush.msra.mxu0 %v360
    %613 = vmatpush.msra.mxu0 %v357
    %614 = vmatpush.msra.mxu0 %v354
    %615 = vmatpush.msra.mxu0 %v351
    %616 = vmatpush.msra.mxu0 %v348
    %617 = vmatpush.msra.mxu0 %v345
    %618 = vmatpush.msra.mxu0 %v342
    %619 = vmatpush.msra.mxu0 %v339
    %620 = vmatmul.f32.gmra.mxu0 %v193
    %v621 = vpop.f32.mrf.mxu0
    %v622 = vadd.f32 %v602, %v621
    %623 = vdwg.mxu0
    %624 = vmatpush.msra.mxu0 %v241
    %625 = vmatpush.msra.mxu0 %v238
    %626 = vmatpush.msra.mxu0 %v235
    %627 = vmatpush.msra.mxu0 %v232
    %628 = vmatpush.msra.mxu0 %v229
    %629 = vmatpush.msra.mxu0 %v226
    %630 = vmatpush.msra.mxu0 %v223
    %631 = vmatpush.msra.mxu0 %v220
    %632 = vmatpush.msra.mxu0 %v217
    %633 = vmatpush.msra.mxu0 %v214
    %634 = vmatpush.msra.mxu0 %v211
    %635 = vmatpush.msra.mxu0 %v208
    %636 = vmatpush.msra.mxu0 %v205
    %637 = vmatpush.msra.mxu0 %v202
    %638 = vmatpush.msra.mxu0 %v199
    %639 = vmatpush.msra.mxu0 %v196
    %640 = vmatmul.f32.gmra.mxu0 %v190
    %v641 = vpop.f32.mrf.mxu0
    %v642 = vadd.f32 %v462, %v641
    %643 = vdwg.mxu0
    %644 = vmatpush.msra.mxu0 %v289
    %645 = vmatpush.msra.mxu0 %v286
    %646 = vmatpush.msra.mxu0 %v283
    %647 = vmatpush.msra.mxu0 %v280
    %648 = vmatpush.msra.mxu0 %v277
    %649 = vmatpush.msra.mxu0 %v274
    %650 = vmatpush.msra.mxu0 %v271
    %651 = vmatpush.msra.mxu0 %v268
    %652 = vmatpush.msra.mxu0 %v265
    %653 = vmatpush.msra.mxu0 %v262
    %654 = vmatpush.msra.mxu0 %v259
    %655 = vmatpush.msra.mxu0 %v256
    %656 = vmatpush.msra.mxu0 %v253
    %657 = vmatpush.msra.mxu0 %v250
    %658 = vmatpush.msra.mxu0 %v247
    %659 = vmatpush.msra.mxu0 %v244
    %660 = vmatmul.f32.gmra.mxu0 %v191
    %v661 = vpop.f32.mrf.mxu0
    %v662 = vadd.f32 %v642, %v661
    %663 = vdwg.mxu0
    %664 = vmatpush.msra.mxu0 %v337
    %665 = vmatpush.msra.mxu0 %v334
    %666 = vmatpush.msra.mxu0 %v331
    %667 = vmatpush.msra.mxu0 %v328
    %668 = vmatpush.msra.mxu0 %v325
    %669 = vmatpush.msra.mxu0 %v322
    %670 = vmatpush.msra.mxu0 %v319
    %671 = vmatpush.msra.mxu0 %v316
    %672 = vmatpush.msra.mxu0 %v313
    %673 = vmatpush.msra.mxu0 %v310
    %674 = vmatpush.msra.mxu0 %v307
    %675 = vmatpush.msra.mxu0 %v304
    %676 = vmatpush.msra.mxu0 %v301
    %677 = vmatpush.msra.mxu0 %v298
    %678 = vmatpush.msra.mxu0 %v295
    %679 = vmatpush.msra.mxu0 %v292
    %680 = vmatmul.f32.gmra.mxu0 %v192
    %v681 = vpop.f32.mrf.mxu0
    %v682 = vadd.f32 %v662, %v681
    %683 = vdwg.mxu0
    %684 = vmatpush.msra.mxu0 %v385
    %685 = vmatpush.msra.mxu0 %v382
    %686 = vmatpush.msra.mxu0 %v379
    %687 = vmatpush.msra.mxu0 %v376
    %688 = vmatpush.msra.mxu0 %v373
    %689 = vmatpush.msra.mxu0 %v370
    %690 = vmatpush.msra.mxu0 %v367
    %691 = vmatpush.msra.mxu0 %v364
    %692 = vmatpush.msra.mxu0 %v361
    %693 = vmatpush.msra.mxu0 %v358
    %694 = vmatpush.msra.mxu0 %v355
    %695 = vmatpush.msra.mxu0 %v352
    %696 = vmatpush.msra.mxu0 %v349
    %697 = vmatpush.msra.mxu0 %v346
    %698 = vmatpush.msra.mxu0 %v343
    %699 = vmatpush.msra.mxu0 %v340
    %700 = vmatmul.f32.gmra.mxu0 %v193
    %v701 = vpop.f32.mrf.mxu0
    %v702 = vadd.f32 %v682, %v701
    %703 = vdwg.mxu0
    %v704 = vld [vmem:[%s6] sm:$0x7]
    %v706 = vperm.slane %v704, 0
    %v707 = vperm.slane %v704, 1
    %v708 = vperm.slane %v704, 2
    %v712 = vadd.f32 %v542, %v706
    %v713 = vadd.f32 %v622, %v707
    %v714 = vadd.f32 %v702, %v708
    %v715 = vmax.f32 %v712, 0.0
    %v716 = vmax.f32 %v713, 0.0
    %v717 = vmax.f32 %v714, 0.0
    %v718 = vld [vmem:[#allocation8] sm:$0x7]
    %v720 = vperm.slane %v718, 0
    %v721 = vperm.slane %v718, 1
    %v722 = vperm.slane %v718, 2
    %v726 = vmul.f32 %v715, %v720
    %v727 = vmul.f32 %v716, %v721
    %v728 = vmul.f32 %v717, %v722
    %v729 = vadd.f32 %v726, %v727
    %v730 = vadd.f32 %v729, %v728
    %731 = vadd.xlane.f32.xlu0 %v730
    %v732 = vpop.xlane.xlu0 %731
    %v733 = vld [vmem:[#allocation2] sm:$0x1]
    %v735 = vperm.slane %v733, 0
    %v737 = vadd.f32 %v732, %v735
    %vm738 = vcmask 7168
    %739 = vst.msk [vmem:[%s9] sm:$0xff] %vm738, %v737
    // Predicated region
    $region54: #{tpu_custom_call.1} parent=1 // pred_check
      _
    $region55: #{tpu_custom_call.1} parent=1 // pred_check_branch
      %741 = sbr.rel (0) target = $region57
    $region56: #{tpu_custom_call.1} parent=1 // pred_region
      _
    $region57: #{tpu_custom_call.1} parent=1 // pred_fallthru
      _
    // Predicated region
    $region58: #{tpu_custom_call.1} parent=1 // pred_check
      _
    $region59: #{tpu_custom_call.1} parent=1 // pred_check_branch
      %743 = sbr.rel (0) target = $region61
    $region60: #{tpu_custom_call.1} parent=1 // pred_region
      _
    $region61: #{tpu_custom_call.1} parent=1 // pred_fallthru
      _
    %744 = vsyncpa [#allocation4], 1
    %745 = vsyncpa [#allocation6], 1
    %746 = vsyncpa [#allocation9], 1

</llo_original>
